<compile_context>
chip_gen: v7x
topology: tpu7x:2x2x1
jax: 0.10.0
libtpu: 0.0.40
codegen_flags: <defaults>
</compile_context>

<pallas_src>
import functools

import jax
import jax.numpy as jnp
from jax.experimental import pallas as pl
from jax.experimental.pallas import tpu as pltpu


_W_RESIDENT_BUDGET = 24 * 1024 * 1024   # keep the resident fused W under ~24 MiB
_VMEM_BUDGET = 40 * 1024 * 1024         # total VMEM plan target (safe for v7x's 64 MiB)


def _round_up(x, m):
    return ((x + m - 1) // m) * m


def _pick_tile_m(n, per_row_bytes, fixed_bytes, budget=_VMEM_BUDGET):
    """Largest row tile (multiple of 8, <= 512) whose VMEM plan fits `budget`."""
    n8 = _round_up(max(n, 1), 8)
    for tm in (512, 256, 128, 64, 32, 16, 8):
        if tm > n8:
            continue
        if fixed_bytes + tm * per_row_bytes <= budget:
            return tm
    return 8


def _pick_tile_k(d_pad, cap=2048):
    """Largest 128-multiple divisor of d_pad (d_pad % 128 == 0), capped at `cap`."""
    best = 128
    t = 128
    while t <= min(cap, d_pad):
        if d_pad % t == 0:
            best = t
        t += 128
    return best


def _fused_linear_kernel(x_ref, w_ref, b_ref, out_ref):
    """Single-K-step path: out = x @ W + b with W fully resident in VMEM."""
    x = x_ref[...].astype(w_ref.dtype)            # f32 -> bf16 cast in-kernel
    acc = jnp.dot(x, w_ref[...], preferred_element_type=jnp.float32)
    out_ref[...] = (acc + b_ref[...]).astype(out_ref.dtype)


def _fused_linear_acc_kernel(x_ref, w_ref, b_ref, out_ref, acc_ref):
    """K-tiled fallback: accumulate x @ W in f32, accumulator seeded with bias."""
    k = pl.program_id(1)

    @pl.when(k == 0)
    def _():
        acc_ref[...] = jnp.broadcast_to(b_ref[...], acc_ref.shape)

    acc_ref[...] += jnp.dot(x_ref[...].astype(w_ref.dtype), w_ref[...],
                            preferred_element_type=jnp.float32)

    @pl.when(k == pl.num_programs(1) - 1)
    def _():
        out_ref[...] = acc_ref[...].astype(out_ref.dtype)


def prepare_fast_rcnn_params(wc, bc, wb, bb, compute_dtype=jnp.bfloat16):
    """One-time parameter prep: transpose, fuse both heads, pad lanes, cast.

    wc: (num_classes+1, D), wb: (num_bbox_reg_classes*box_dim, D).
    Returns (w_fused, b_fused, c1, c2) where
      w_fused: (D[_pad], Cout_pad) compute_dtype, b_fused: (1, Cout_pad) f32.
    """
    c1, d = wc.shape
    c2 = wb.shape[0]
    cout = c1 + c2
    cout_pad = _round_up(cout, 128)

    w = jnp.concatenate([wc, wb], axis=0).T.astype(compute_dtype)   # (D, Cout)
    w = jnp.pad(w, ((0, 0), (0, cout_pad - cout)))

    w_bytes = d * cout_pad * jnp.dtype(compute_dtype).itemsize
    if w_bytes > _W_RESIDENT_BUDGET and d % 128 != 0:
        # Rare streamed-W fallback needs a 128-multiple K tile: zero-pad W rows.
        w = jnp.pad(w, ((0, _round_up(d, 128) - d), (0, 0)))

    b = jnp.concatenate([bc, bb], axis=0).astype(jnp.float32)
    b = jnp.pad(b, (0, cout_pad - cout)).reshape(1, cout_pad)
    return w, b, c1, c2


@functools.partial(jax.jit, static_argnames=("c1", "c2"))
def fast_rcnn_output_layers_forward(x, w_fused, b_fused, *, c1, c2):
    """x: (N, C, H, W) or (N, D); w_fused/b_fused from prepare_fast_rcnn_params."""
    if x.ndim > 2:
        x = x.reshape(x.shape[0], -1)          # torch.flatten(x, start_dim=1)
    n, d = x.shape
    d_pad, cout_pad = w_fused.shape
    assert d_pad >= d, "weights were prepared for a different input size"
    out_dtype = x.dtype

    x_isz = jnp.dtype(x.dtype).itemsize
    w_isz = jnp.dtype(w_fused.dtype).itemsize
    out_isz = jnp.dtype(out_dtype).itemsize
    w_bytes = d_pad * cout_pad * w_isz
    b_bytes = cout_pad * 4

    if w_bytes <= _W_RESIDENT_BUDGET and d_pad == d:
        # ---- resident-W, single-K-step path (covers realistic box heads) ----
        per_row = 2 * d * x_isz + 2 * cout_pad * out_isz   # dbl-buffered x + out
        tile_m = _pick_tile_m(n, per_row, w_bytes + b_bytes)
        need = w_bytes + b_bytes + tile_m * per_row
        vmem_limit = int(min(max(need + (4 << 20), 32 << 20), 60 << 20))
        # Note (v7x): for large N prefer an even number of M tiles so both
        # TensorCores get work under the "parallel" axis.
        out = pl.pallas_call(
            _fused_linear_kernel,
            out_shape=jax.ShapeDtypeStruct((n, cout_pad), out_dtype),
            grid_spec=pltpu.PrefetchScalarGridSpec(
                num_scalar_prefetch=0,
                grid=(pl.cdiv(n, tile_m),),
                in_specs=[
                    pl.BlockSpec((tile_m, d), lambda i: (i, 0)),        # x rows
                    pl.BlockSpec(memory_space=pltpu.MemorySpace.VMEM),  # resident W
                    pl.BlockSpec(memory_space=pltpu.MemorySpace.VMEM),  # resident bias
                ],
                out_specs=pl.BlockSpec((tile_m, cout_pad), lambda i: (i, 0)),
            ),
            compiler_params=pltpu.CompilerParams(
                dimension_semantics=("parallel",),
                vmem_limit_bytes=vmem_limit),
        )(x, w_fused, b_fused)
    else:
        # ---- streamed-W fallback for very large input_size ----
        if d_pad != d:
            # Rare: D not a multiple of 128 AND W too big to keep resident;
            # pad/cast x once (costs an extra HBM pass, correctness first).
            x = jnp.pad(x.astype(w_fused.dtype), ((0, 0), (0, d_pad - d)))
            x_isz = w_isz
        tile_k = _pick_tile_k(d_pad)
        fixed = 2 * tile_k * cout_pad * w_isz + b_bytes
        per_row = 2 * tile_k * x_isz + 2 * cout_pad * out_isz + cout_pad * 4
        tile_m = _pick_tile_m(n, per_row, fixed)
        need = fixed + tile_m * per_row
        vmem_limit = int(min(max(need + (4 << 20), 32 << 20), 60 << 20))
        out = pl.pallas_call(
            _fused_linear_acc_kernel,
            out_shape=jax.ShapeDtypeStruct((n, cout_pad), out_dtype),
            grid_spec=pltpu.PrefetchScalarGridSpec(
                num_scalar_prefetch=0,
                grid=(pl.cdiv(n, tile_m), d_pad // tile_k),
                in_specs=[
                    pl.BlockSpec((tile_m, tile_k), lambda i, k: (i, k)),    # x tile
                    pl.BlockSpec((tile_k, cout_pad), lambda i, k: (k, 0)),  # W tile
                    pl.BlockSpec(memory_space=pltpu.MemorySpace.VMEM),      # bias
                ],
                out_specs=pl.BlockSpec((tile_m, cout_pad), lambda i, k: (i, 0)),
                scratch_shapes=[pltpu.VMEM((tile_m, cout_pad), jnp.float32)],
            ),
            compiler_params=pltpu.CompilerParams(
                dimension_semantics=("parallel", "arbitrary"),
                vmem_limit_bytes=vmem_limit),
        )(x, w_fused, b_fused)

    scores = out[:, :c1]
    proposal_deltas = out[:, c1:c1 + c2]
    return scores, proposal_deltas


if __name__ == "__main__":
    # Module configuration (small, consistent with the PyTorch __init__):
    #   input_shape = ShapeSpec(channels=4, height=8, width=8) -> input_size = 256
    #   num_classes = 10, box2box_transform.weights has len 4 -> box_dim = 4
    #   cls_agnostic_bbox_reg = False -> num_bbox_reg_classes = num_classes = 10
    N, C, H, W = 8, 4, 8, 8
    num_classes = 10
    box_dim = 4
    input_size = C * H * W
    c1 = num_classes + 1                 # cls_score out
    c2 = num_classes * box_dim           # bbox_pred out

    key = jax.random.PRNGKey(0)
    kx, kwc, kwb = jax.random.split(key, 3)

    x = jax.random.normal(kx, (N, C, H, W), dtype=jnp.float32)
    # nn.init.normal_(cls_score.weight, std=0.01); bias = 0
    wc = 0.01 * jax.random.normal(kwc, (c1, input_size), dtype=jnp.float32)
    bc = jnp.zeros((c1,), dtype=jnp.float32)
    # nn.init.normal_(bbox_pred.weight, std=0.001); bias = 0
    wb = 0.001 * jax.random.normal(kwb, (c2, input_size), dtype=jnp.float32)
    bb = jnp.zeros((c2,), dtype=jnp.float32)

    # One-time parameter preparation (transpose/fuse/pad/cast hoisted here).
    w_fused, b_fused, c1_p, c2_p = prepare_fast_rcnn_params(wc, bc, wb, bb)

    scores, deltas = fast_rcnn_output_layers_forward(
        x, w_fused, b_fused, c1=c1_p, c2=c2_p)
    scores, deltas = jax.block_until_ready((scores, deltas))

    # Reference check in plain JAX (f32).  Tolerance loosened for bf16 compute
    # with f32 accumulation.
    x2 = x.reshape(N, -1)
    ref_scores = x2 @ wc.T + bc
    ref_deltas = x2 @ wb.T + bb
    assert scores.shape == (N, c1) and deltas.shape == (N, c2)
    assert jnp.allclose(scores, ref_scores, atol=1e-2, rtol=1e-2)
    assert jnp.allclose(deltas, ref_deltas, atol=1e-2, rtol=1e-2)

    print("KERNEL_OK")
</pallas_src>

<mosaic_0001>
module attributes {stable_mosaic.version = 11 : i64} {
  func.func @_fused_linear_kernel(%arg0: i32, %arg1: memref<8x256xf32, #tpu.memory_space<vmem>>, %arg2: memref<256x128xbf16, #tpu.memory_space<vmem>>, %arg3: memref<1x128xf32, #tpu.memory_space<vmem>>, %arg4: memref<8x128xf32, #tpu.memory_space<vmem>>) attributes {dimension_semantics = [#tpu.dimension_semantics<parallel>], iteration_bounds = array<i64: 1>, scalar_prefetch = 0 : i64, scratch_operands = 0 : i64, tpu.core_type = #tpu.core_type<tc>, window_params = [{transform_indices = @transform_0, window_bounds = array<i64: 8, 256>}, {pipeline_mode = #tpu.pipeline_mode<synchronous>, transform_indices = @transform_1, window_bounds = array<i64: 256, 128>}, {pipeline_mode = #tpu.pipeline_mode<synchronous>, transform_indices = @transform_2, window_bounds = array<i64: 1, 128>}, {transform_indices = @transform_3, window_bounds = array<i64: 8, 128>}]} {
    %c0 = arith.constant 0 : index
    %c0_0 = arith.constant 0 : index
    %0 = vector.load %arg1[%c0, %c0_0] : memref<8x256xf32, #tpu.memory_space<vmem>>, vector<8x256xf32>
    %1 = arith.truncf %0 : vector<8x256xf32> to vector<8x256xbf16>
    %c0_1 = arith.constant 0 : index
    %c0_2 = arith.constant 0 : index
    %2 = vector.load %arg2[%c0_1, %c0_2] : memref<256x128xbf16, #tpu.memory_space<vmem>>, vector<256x128xbf16>
    %cst = arith.constant dense<0.000000e+00> : vector<8x128xf32>
    %3 = tpu.matmul %1, %2, %cst {dimension_numbers = #tpu.dot_dimension_numbers<[1], [0], [0], [1], [0, 0, 1, 1], [], []>} : vector<8x256xbf16>, vector<256x128xbf16>, vector<8x128xf32> -> vector<8x128xf32>
    %c0_3 = arith.constant 0 : index
    %c0_4 = arith.constant 0 : index
    %4 = vector.load %arg3[%c0_3, %c0_4] : memref<1x128xf32, #tpu.memory_space<vmem>>, vector<1x128xf32>
    %5 = vector.broadcast %4 : vector<1x128xf32> to vector<8x128xf32>
    %6 = arith.addf %3, %5 : vector<8x128xf32>
    %c0_5 = arith.constant 0 : index
    %c0_6 = arith.constant 0 : index
    %7 = vector.load %arg4[%c0_5, %c0_6] : memref<8x128xf32, #tpu.memory_space<vmem>>, vector<8x128xf32>
    tpu.vector_store %arg4[%c0_5, %c0_6], %6 {strides = array<i32>} : memref<8x128xf32, #tpu.memory_space<vmem>>, vector<8x128xf32>,
    return
  }
  func.func @transform_0(%arg0: i32) -> (i32, i32) {
    %c0_i32 = arith.constant 0 : i32
    %c0_i32_0 = arith.constant 0 : i32
    return %arg0, %c0_i32 : i32, i32
  }
  func.func @transform_1(%arg0: i32) -> (i32, i32) {
    %c0_i32 = arith.constant 0 : i32
    %c0_i32_0 = arith.constant 0 : i32
    %c0_i32_1 = arith.constant 0 : i32
    return %c0_i32, %c0_i32_0 : i32, i32
  }
  func.func @transform_2(%arg0: i32) -> (i32, i32) {
    %c0_i32 = arith.constant 0 : i32
    %c0_i32_0 = arith.constant 0 : i32
    %c0_i32_1 = arith.constant 0 : i32
    return %c0_i32, %c0_i32_0 : i32, i32
  }
  func.func @transform_3(%arg0: i32) -> (i32, i32) {
    %c0_i32 = arith.constant 0 : i32
    %c0_i32_0 = arith.constant 0 : i32
    return %arg0, %c0_i32 : i32, i32
  }
}

</mosaic_0001>

<llo_original>
// kernel: fast_rcnn_output_layers_forward.1
$region0: #{fast_rcnn_output_layers_forward.1}
  #allocation0 [shape = 'u32[]', space=smem, size = 0x4, offset = 0x4, fixed_abs, tag = 'smem constant byte address 0x4 - core index']
  #allocation1 [shape = 'u32[144,128]{1,0:T(1,128)}', space=vmem, size = 0x12000, scoped, tag = 'internal scratch']
  %s0 = inlined_call_operand.vmem [shape: f32[8,256], index: 0, kind: input, shape index: {}]
  %s1 = inlined_call_operand.vmem [shape: bf16[256,128], index: 1, kind: input, shape index: {}]
  %s2 = inlined_call_operand.vmem [shape: f32[1,128], index: 2, kind: input, shape index: {}]
  %s3 = inlined_call_operand.vmem [shape: f32[8,128], index: 3, kind: output, shape index: {}]
  %s4 = sld [smem:[#allocation0]]
  $region22: #{fast_rcnn_output_layers_forward.1} parent=0
    _
  %s6 = ssub.s32 1, %s4
  %s7 = scalar_select 0, %s6, %s4
  // Predicated region
  $region2: #{fast_rcnn_output_layers_forward.1} parent=0 // pred_check
    _
  $region3: #{fast_rcnn_output_layers_forward.1} parent=0 // pred_check_branch
    %9 = sbr.rel (0) target = $region5
  $region4: #{fast_rcnn_output_layers_forward.1} parent=0 // pred_region
    _
  $region5: #{fast_rcnn_output_layers_forward.1} parent=0 // pred_fallthru
    _
  // Predicated region
  $region6: #{fast_rcnn_output_layers_forward.1} parent=0 // pred_check
    _
  $region7: #{fast_rcnn_output_layers_forward.1} parent=0 // pred_check_branch
    %11 = sbr.rel (0) target = $region9
  $region8: #{fast_rcnn_output_layers_forward.1} parent=0 // pred_region
    _
  $region9: #{fast_rcnn_output_layers_forward.1} parent=0 // pred_fallthru
    _
  // Predicated region
  $region10: #{fast_rcnn_output_layers_forward.1} parent=0 // pred_check
    _
  $region11: #{fast_rcnn_output_layers_forward.1} parent=0 // pred_check_branch
    %13 = sbr.rel (0) target = $region13
  $region12: #{fast_rcnn_output_layers_forward.1} parent=0 // pred_region
    _
  $region13: #{fast_rcnn_output_layers_forward.1} parent=0 // pred_fallthru
    _
  %v15 = vld [vmem:[%s0] sm:$0xff]
  %v16 = vld [vmem:[%s0 + $0x8] sm:$0xff]
  %v17 = vpack.c.bf16 %v15, %v15
  %v18 = vpack.c.bf16 %v16, %v16
  %v19 = vld [vmem:[%s1] sm:$0xf]
  %v20 = vld [vmem:[%s1 + $0x4] sm:$0xf]
  %v21 = vld [vmem:[%s1 + $0x8] sm:$0xf]
  %v22 = vld [vmem:[%s1 + $0xc] sm:$0xf]
  %v23 = vld [vmem:[%s1 + $0x10] sm:$0xf]
  %v24 = vld [vmem:[%s1 + $0x14] sm:$0xf]
  %v25 = vld [vmem:[%s1 + $0x18] sm:$0xf]
  %v26 = vld [vmem:[%s1 + $0x1c] sm:$0xf]
  %v27 = vld [vmem:[%s1 + $0x20] sm:$0xf]
  %v28 = vld [vmem:[%s1 + $0x24] sm:$0xf]
  %v29 = vld [vmem:[%s1 + $0x28] sm:$0xf]
  %v30 = vld [vmem:[%s1 + $0x2c] sm:$0xf]
  %v31 = vld [vmem:[%s1 + $0x30] sm:$0xf]
  %v32 = vld [vmem:[%s1 + $0x34] sm:$0xf]
  %v33 = vld [vmem:[%s1 + $0x38] sm:$0xf]
  %v34 = vld [vmem:[%s1 + $0x3c] sm:$0xf]
  %v35 = vld [vmem:[%s1 + $0x40] sm:$0xf]
  %v36 = vld [vmem:[%s1 + $0x44] sm:$0xf]
  %v37 = vld [vmem:[%s1 + $0x48] sm:$0xf]
  %v38 = vld [vmem:[%s1 + $0x4c] sm:$0xf]
  %v39 = vld [vmem:[%s1 + $0x50] sm:$0xf]
  %v40 = vld [vmem:[%s1 + $0x54] sm:$0xf]
  %v41 = vld [vmem:[%s1 + $0x58] sm:$0xf]
  %v42 = vld [vmem:[%s1 + $0x5c] sm:$0xf]
  %v43 = vld [vmem:[%s1 + $0x60] sm:$0xf]
  %v44 = vld [vmem:[%s1 + $0x64] sm:$0xf]
  %v45 = vld [vmem:[%s1 + $0x68] sm:$0xf]
  %v46 = vld [vmem:[%s1 + $0x6c] sm:$0xf]
  %v47 = vld [vmem:[%s1 + $0x70] sm:$0xf]
  %v48 = vld [vmem:[%s1 + $0x74] sm:$0xf]
  %v49 = vld [vmem:[%s1 + $0x78] sm:$0xf]
  %v50 = vld [vmem:[%s1 + $0x7c] sm:$0xf]
  %v51 = vld [vmem:[%s2] sm:$0x1]
  %v53 = vlaneseq
  %v54 = vshrl.u32 %v53, 7
  %v55 = vsub.s32 0, %v54
  %v56 = vrot.slane %v51, %v55
  %v90 = vunpack.c.l.b16 %v19
  %v91 = vunpack.c.l.b16 %v20
  %v92 = vunpack.c.l.b16 %v21
  %v93 = vunpack.c.l.b16 %v22
  %v94 = vunpack.c.l.b16 %v23
  %v95 = vunpack.c.l.b16 %v24
  %v96 = vunpack.c.l.b16 %v25
  %v97 = vunpack.c.l.b16 %v26
  %v98 = vunpack.c.l.b16 %v27
  %v99 = vunpack.c.l.b16 %v28
  %v100 = vunpack.c.l.b16 %v29
  %v101 = vunpack.c.l.b16 %v30
  %v102 = vunpack.c.l.b16 %v31
  %v103 = vunpack.c.l.b16 %v32
  %v104 = vunpack.c.l.b16 %v33
  %v105 = vunpack.c.l.b16 %v34
  %v106 = vunpack.c.l.b16 %v35
  %v107 = vunpack.c.l.b16 %v36
  %v108 = vunpack.c.l.b16 %v37
  %v109 = vunpack.c.l.b16 %v38
  %v110 = vunpack.c.l.b16 %v39
  %v111 = vunpack.c.l.b16 %v40
  %v112 = vunpack.c.l.b16 %v41
  %v113 = vunpack.c.l.b16 %v42
  %v114 = vunpack.c.l.b16 %v43
  %v115 = vunpack.c.l.b16 %v44
  %v116 = vunpack.c.l.b16 %v45
  %v117 = vunpack.c.l.b16 %v46
  %v118 = vunpack.c.l.b16 %v47
  %v119 = vunpack.c.l.b16 %v48
  %v120 = vunpack.c.l.b16 %v49
  %v121 = vunpack.c.l.b16 %v50
  %v122 = vpack.c.b16 %v91, %v90
  %v123 = vpack.c.b16 %v93, %v92
  %v124 = vpack.c.b16 %v95, %v94
  %v125 = vpack.c.b16 %v97, %v96
  %v126 = vpack.c.b16 %v99, %v98
  %v127 = vpack.c.b16 %v101, %v100
  %v128 = vpack.c.b16 %v103, %v102
  %v129 = vpack.c.b16 %v105, %v104
  %v130 = vpack.c.b16 %v107, %v106
  %v131 = vpack.c.b16 %v109, %v108
  %v132 = vpack.c.b16 %v111, %v110
  %v133 = vpack.c.b16 %v113, %v112
  %v134 = vpack.c.b16 %v115, %v114
  %v135 = vpack.c.b16 %v117, %v116
  %v136 = vpack.c.b16 %v119, %v118
  %v137 = vpack.c.b16 %v121, %v120
  %154 = vmatprep.subr.bf16.mxu0 0
  %155 = vmatpush1.bf16.msra.mxu0 %v122
  %156 = vmatprep.subr.bf16.mxu0 0
  %157 = vmatpush1.bf16.msra.mxu0 %v123
  %158 = vmatprep.subr.bf16.mxu0 0
  %159 = vmatpush1.bf16.msra.mxu0 %v124
  %160 = vmatprep.subr.bf16.mxu0 0
  %161 = vmatpush1.bf16.msra.mxu0 %v125
  %162 = vmatprep.subr.bf16.mxu0 0
  %163 = vmatpush1.bf16.msra.mxu0 %v126
  %164 = vmatprep.subr.bf16.mxu0 0
  %165 = vmatpush1.bf16.msra.mxu0 %v127
  %166 = vmatprep.subr.bf16.mxu0 0
  %167 = vmatpush1.bf16.msra.mxu0 %v128
  %168 = vmatprep.subr.bf16.mxu0 0
  %169 = vmatpush1.bf16.msra.mxu0 %v129
  %170 = vmatprep.subr.bf16.mxu0 0
  %171 = vmatpush1.bf16.msra.mxu0 %v130
  %172 = vmatprep.subr.bf16.mxu0 0
  %173 = vmatpush1.bf16.msra.mxu0 %v131
  %174 = vmatprep.subr.bf16.mxu0 0
  %175 = vmatpush1.bf16.msra.mxu0 %v132
  %176 = vmatprep.subr.bf16.mxu0 0
  %177 = vmatpush1.bf16.msra.mxu0 %v133
  %178 = vmatprep.subr.bf16.mxu0 0
  %179 = vmatpush1.bf16.msra.mxu0 %v134
  %180 = vmatprep.subr.bf16.mxu0 0
  %181 = vmatpush1.bf16.msra.mxu0 %v135
  %182 = vmatprep.subr.bf16.mxu0 0
  %183 = vmatpush1.bf16.msra.mxu0 %v136
  %184 = vmatprep.subr.bf16.mxu0 0
  %185 = vmatpush1.bf16.msra.mxu0 %v137
  %186 = vmatprep.mubr.bf16.mxu0 %v18
  %187 = vmatmul.mubr.bf16.gmra.mrb[0].mxu0 %v17
  %v188 = vpop.f32.mrb[0].mxu0
  %v189 = vadd.f32 %v56, %v188
  %v190 = vpop.f32.mrb[0].mxu0
  %v191 = vpop.f32.mrb[0].mxu0
  %v192 = vpop.f32.mrb[0].mxu0
  %193 = vdwg.mxu0
  %194 = vst [vmem:[%s3] sm:$0xff] %v189
  // Predicated region
  $region14: #{fast_rcnn_output_layers_forward.1} parent=0 // pred_check
    _
  $region15: #{fast_rcnn_output_layers_forward.1} parent=0 // pred_check_branch
    %196 = sbr.rel (0) target = $region17
  $region16: #{fast_rcnn_output_layers_forward.1} parent=0 // pred_region
    _
  $region17: #{fast_rcnn_output_layers_forward.1} parent=0 // pred_fallthru
    _
  // Predicated region
  $region18: #{fast_rcnn_output_layers_forward.1} parent=0 // pred_check
    _
  $region19: #{fast_rcnn_output_layers_forward.1} parent=0 // pred_check_branch
    %198 = sbr.rel (0) target = $region21
  $region20: #{fast_rcnn_output_layers_forward.1} parent=0 // pred_region
    _
  $region21: #{fast_rcnn_output_layers_forward.1} parent=0 // pred_fallthru
    _

</llo_original>
